<compile_context>
chip_gen: v6e
topology: v6e:2x2x1
jax: 0.10.0
libtpu: 0.0.40
codegen_flags: <defaults>
</compile_context>

<pallas_src>
import functools

import jax
import jax.numpy as jnp
from jax.experimental import pallas as pl
from jax.experimental.pallas import tpu as pltpu

_EPS = 1e-8
_TARGET_BLOCK_BYTES = 2 << 20          # ~2 MiB per input plane per tile
_VMEM_SAFE_BYTES = 48 * 1024 * 1024    # conservative cross-chip cap (v7x: 64 MiB phys)
_LIVE_BLOCKS = 14                      # 4 planes x 2 pipeline buffers + ~6 tile temporaries


def _csisnr_rows_kernel(fr_ref, fi_ref, cr_ref, ci_ref, out_ref):
    """Per-row SI-SNR (dB) for one (TB, N) batch tile of planar complex data."""
    fr = fr_ref[...]
    fi = fi_ref[...]
    cr = cr_ref[...]
    ci = ci_ref[...]
    n = fr.shape[-1]
    inv_n = 1.0 / n

    # ---- pass 1: one raw-moment sweep (centering folded in) ----------------
    s_fr = jnp.sum(fr, axis=-1, keepdims=True)
    s_fi = jnp.sum(fi, axis=-1, keepdims=True)
    s_cr = jnp.sum(cr, axis=-1, keepdims=True)
    s_ci = jnp.sum(ci, axis=-1, keepdims=True)
    s_fc_r = jnp.sum(fr * cr + fi * ci, axis=-1, keepdims=True)
    s_fc_i = jnp.sum(fi * cr - fr * ci, axis=-1, keepdims=True)
    s_cc = jnp.sum(cr * cr + ci * ci, axis=-1, keepdims=True)

    m_fr = s_fr * inv_n
    m_fi = s_fi * inv_n
    m_cr = s_cr * inv_n
    m_ci = s_ci * inv_n

    # Centered <f, conj(c)> and centered clean power via moment identities.
    inner_r = s_fc_r - (s_fr * m_cr + s_fi * m_ci)
    inner_i = s_fc_i - (s_fi * m_cr - s_fr * m_ci)
    clean_power_c = s_cc - (s_cr * m_cr + s_ci * m_ci)     # centered, no eps
    clean_power = clean_power_c + _EPS

    scale_r = inner_r / clean_power
    scale_i = inner_i / clean_power

    # proj_power = sum |scale * c_centered|^2 = |scale|^2 * centered clean power
    # (exact; eps is not double-counted because we use clean_power_c here).
    proj_power = (scale_r * scale_r + scale_i * scale_i) * clean_power_c

    # ---- pass 2 (fused): error = (f - m_f) - scale * (c - m_c) -------------
    # Centering constants folded into per-row scalars k_r / k_i so that the
    # centered planes and scaled-clean planes are never materialized.
    k_r = m_fr - (scale_r * m_cr - scale_i * m_ci)
    k_i = m_fi - (scale_r * m_ci + scale_i * m_cr)
    er_r = fr - (scale_r * cr - scale_i * ci) - k_r
    er_i = fi - (scale_r * ci + scale_i * cr) - k_i
    error_power = jnp.sum(er_r * er_r + er_i * er_i, axis=-1, keepdims=True) + _EPS

    out_ref[...] = 10.0 * jnp.log10(proj_power / error_power)


def _choose_block_rows(b, n, block_rows):
    """Batch-tile rows: multiple of 8 (or the full batch), VMEM-safe, >=2 tiles when possible."""
    max_tb = max(8, (_VMEM_SAFE_BYTES // (_LIVE_BLOCKS * n * 4)) // 8 * 8)
    if block_rows is None:
        tb = max(8, (_TARGET_BLOCK_BYTES // (n * 4)) // 8 * 8)
    else:
        tb = int(block_rows)
    tb = min(tb, max_tb)
    if tb >= b:
        if b >= 16:
            # Keep >= 2 grid blocks so both v7x TensorCores get work.
            tb = min(max_tb, ((pl.cdiv(b, 2) + 7) // 8) * 8)
        else:
            return b                         # single full-batch tile (full-dim block)
    assert tb % 8 == 0, "batch tile must be a multiple of 8 sublanes"
    return tb


@functools.partial(jax.jit, static_argnames=("block_rows",))
def csisnr_loss_planar(fr, fi, cr, ci, *, block_rows=None):
    """Complex SI-SNR loss from planar float32 inputs (real/imag planes, shape (B, N))."""
    b, n = fr.shape
    tb = _choose_block_rows(b, n, block_rows)
    num_tiles = pl.cdiv(b, tb)

    in_spec = pl.BlockSpec((tb, n), lambda i: (i, 0))
    out_spec = pl.BlockSpec((tb, 1), lambda i: (i, 0))

    # VMEM budget: 4 planes x 2 pipeline buffers + ~6 tile-sized temporaries.
    block_bytes = tb * n * 4
    vmem_limit = int(min(_VMEM_SAFE_BYTES,
                         max(32 * 1024 * 1024, _LIVE_BLOCKS * block_bytes)))

    si_snr = pl.pallas_call(
        _csisnr_rows_kernel,
        out_shape=jax.ShapeDtypeStruct((b, 1), jnp.float32),
        grid=(num_tiles,),
        in_specs=[in_spec, in_spec, in_spec, in_spec],
        out_specs=out_spec,
        compiler_params=pltpu.CompilerParams(
            dimension_semantics=("parallel",),
            vmem_limit_bytes=vmem_limit,
        ),
    )(fr, fi, cr, ci)

    return -jnp.mean(si_snr[:, 0])


@functools.partial(jax.jit, static_argnames=("block_rows",))
def csisnr_loss(filtered_signal, clean_signal, *, block_rows=None):
    """Complex SI-SNR loss. Inputs: complex arrays of shape (batch, num_snapshots)."""
    assert jnp.iscomplexobj(filtered_signal) and jnp.iscomplexobj(clean_signal), (
        "Inputs must be complex")
    assert filtered_signal.shape == clean_signal.shape
    # Complex -> planar float32 split (single fused XLA pass per input).  Callers
    # that already hold planar data should use csisnr_loss_planar and skip this.
    fr = jnp.real(filtered_signal).astype(jnp.float32)
    fi = jnp.imag(filtered_signal).astype(jnp.float32)
    cr = jnp.real(clean_signal).astype(jnp.float32)
    ci = jnp.imag(clean_signal).astype(jnp.float32)
    return csisnr_loss_planar(fr, fi, cr, ci, block_rows=block_rows)


def _csisnr_loss_ref(filtered_signal, clean_signal):
    """Pure-JAX reference mirroring the PyTorch forward."""
    eps = 1e-8
    f = filtered_signal - jnp.mean(filtered_signal, axis=-1, keepdims=True)
    c = clean_signal - jnp.mean(clean_signal, axis=-1, keepdims=True)
    inner = jnp.sum(f * jnp.conj(c), axis=-1, keepdims=True)
    clean_power = jnp.sum(c * jnp.conj(c), axis=-1, keepdims=True) + eps
    scale = inner / clean_power
    scaled_clean = scale * c
    error = f - scaled_clean
    proj_power = jnp.sum(jnp.abs(scaled_clean) ** 2, axis=-1)
    error_power = jnp.sum(jnp.abs(error) ** 2, axis=-1) + eps
    si_snr = 10.0 * jnp.log10(proj_power / error_power)
    return -jnp.mean(si_snr)


if __name__ == "__main__":
    key = jax.random.PRNGKey(0)

    def make_case(k, b, n, noise_level=0.3):
        k1, k2, k3, k4 = jax.random.split(k, 4)
        clean = (jax.random.normal(k1, (b, n), jnp.float32)
                 + 1j * jax.random.normal(k2, (b, n), jnp.float32)).astype(jnp.complex64)
        noise = (jax.random.normal(k3, (b, n), jnp.float32)
                 + 1j * jax.random.normal(k4, (b, n), jnp.float32)).astype(jnp.complex64)
        return clean + noise_level * noise, clean

    cases = [
        dict(b=2, n=128, block_rows=None),    # module's (batch, num_snapshots), single tile
        dict(b=16, n=256, block_rows=None),   # auto-split into 2 tiles (megacore path)
        dict(b=24, n=256, block_rows=8),      # multi-tile, batch divides evenly
        dict(b=20, n=256, block_rows=8),      # ragged batch -> OOB-masked last tile, no pad
        dict(b=10, n=256, block_rows=None),   # small ragged batch -> single full-dim tile
    ]
    for idx, case in enumerate(cases):
        key, sub = jax.random.split(key)
        filt, clean = make_case(sub, case["b"], case["n"])
        loss = csisnr_loss(filt, clean, block_rows=case["block_rows"])
        loss = jax.block_until_ready(loss)
        ref = _csisnr_loss_ref(filt, clean)
        assert jnp.allclose(loss, ref, rtol=1e-3, atol=1e-3), (idx, loss, ref)
        # Planar entry point (skips the complex->planar split) must agree too.
        loss_p = csisnr_loss_planar(
            jnp.real(filt).astype(jnp.float32), jnp.imag(filt).astype(jnp.float32),
            jnp.real(clean).astype(jnp.float32), jnp.imag(clean).astype(jnp.float32),
            block_rows=case["block_rows"])
        loss_p = jax.block_until_ready(loss_p)
        assert jnp.allclose(loss_p, ref, rtol=1e-3, atol=1e-3), (idx, loss_p, ref)

    print("KERNEL_OK")
</pallas_src>

<mosaic_0001>
module attributes {stable_mosaic.version = 11 : i64} {
  func.func @_csisnr_rows_kernel(%arg0: i32, %arg1: memref<2x128xf32, #tpu.memory_space<vmem>>, %arg2: memref<2x128xf32, #tpu.memory_space<vmem>>, %arg3: memref<2x128xf32, #tpu.memory_space<vmem>>, %arg4: memref<2x128xf32, #tpu.memory_space<vmem>>, %arg5: memref<2x1xf32, #tpu.memory_space<vmem>>) attributes {dimension_semantics = [#tpu.dimension_semantics<parallel>], iteration_bounds = array<i64: 1>, scalar_prefetch = 0 : i64, scratch_operands = 0 : i64, tpu.core_type = #tpu.core_type<tc>, window_params = [{transform_indices = @transform_0, window_bounds = array<i64: 2, 128>}, {transform_indices = @transform_1, window_bounds = array<i64: 2, 128>}, {transform_indices = @transform_2, window_bounds = array<i64: 2, 128>}, {transform_indices = @transform_3, window_bounds = array<i64: 2, 128>}, {transform_indices = @transform_4, window_bounds = array<i64: 2, 1>}]} {
    %c0 = arith.constant 0 : index
    %c0_0 = arith.constant 0 : index
    %0 = vector.load %arg1[%c0, %c0_0] : memref<2x128xf32, #tpu.memory_space<vmem>>, vector<2x128xf32>
    %c0_1 = arith.constant 0 : index
    %c0_2 = arith.constant 0 : index
    %1 = vector.load %arg2[%c0_1, %c0_2] : memref<2x128xf32, #tpu.memory_space<vmem>>, vector<2x128xf32>
    %c0_3 = arith.constant 0 : index
    %c0_4 = arith.constant 0 : index
    %2 = vector.load %arg3[%c0_3, %c0_4] : memref<2x128xf32, #tpu.memory_space<vmem>>, vector<2x128xf32>
    %c0_5 = arith.constant 0 : index
    %c0_6 = arith.constant 0 : index
    %3 = vector.load %arg4[%c0_5, %c0_6] : memref<2x128xf32, #tpu.memory_space<vmem>>, vector<2x128xf32>
    %cst = arith.constant dense<0.000000e+00> : vector<2xf32>
    %4 = vector.multi_reduction <add>, %0, %cst [1] : vector<2x128xf32> to vector<2xf32>
    %5 = vector.shape_cast %4 : vector<2xf32> to vector<2x1xf32>
    %cst_7 = arith.constant dense<0.000000e+00> : vector<2xf32>
    %6 = vector.multi_reduction <add>, %1, %cst_7 [1] : vector<2x128xf32> to vector<2xf32>
    %7 = vector.shape_cast %6 : vector<2xf32> to vector<2x1xf32>
    %cst_8 = arith.constant dense<0.000000e+00> : vector<2xf32>
    %8 = vector.multi_reduction <add>, %2, %cst_8 [1] : vector<2x128xf32> to vector<2xf32>
    %9 = vector.shape_cast %8 : vector<2xf32> to vector<2x1xf32>
    %cst_9 = arith.constant dense<0.000000e+00> : vector<2xf32>
    %10 = vector.multi_reduction <add>, %3, %cst_9 [1] : vector<2x128xf32> to vector<2xf32>
    %11 = vector.shape_cast %10 : vector<2xf32> to vector<2x1xf32>
    %12 = arith.mulf %0, %2 : vector<2x128xf32>
    %13 = arith.mulf %1, %3 : vector<2x128xf32>
    %14 = arith.addf %12, %13 : vector<2x128xf32>
    %cst_10 = arith.constant dense<0.000000e+00> : vector<2xf32>
    %15 = vector.multi_reduction <add>, %14, %cst_10 [1] : vector<2x128xf32> to vector<2xf32>
    %16 = vector.shape_cast %15 : vector<2xf32> to vector<2x1xf32>
    %17 = arith.mulf %1, %2 : vector<2x128xf32>
    %18 = arith.mulf %0, %3 : vector<2x128xf32>
    %19 = arith.subf %17, %18 : vector<2x128xf32>
    %cst_11 = arith.constant dense<0.000000e+00> : vector<2xf32>
    %20 = vector.multi_reduction <add>, %19, %cst_11 [1] : vector<2x128xf32> to vector<2xf32>
    %21 = vector.shape_cast %20 : vector<2xf32> to vector<2x1xf32>
    %22 = arith.mulf %2, %2 : vector<2x128xf32>
    %23 = arith.mulf %3, %3 : vector<2x128xf32>
    %24 = arith.addf %22, %23 : vector<2x128xf32>
    %cst_12 = arith.constant dense<0.000000e+00> : vector<2xf32>
    %25 = vector.multi_reduction <add>, %24, %cst_12 [1] : vector<2x128xf32> to vector<2xf32>
    %26 = vector.shape_cast %25 : vector<2xf32> to vector<2x1xf32>
    %cst_13 = arith.constant 7.812500e-03 : f32
    %27 = vector.broadcast %cst_13 : f32 to vector<2x1xf32>
    %28 = arith.mulf %5, %27 : vector<2x1xf32>
    %cst_14 = arith.constant 7.812500e-03 : f32
    %29 = vector.broadcast %cst_14 : f32 to vector<2x1xf32>
    %30 = arith.mulf %7, %29 : vector<2x1xf32>
    %cst_15 = arith.constant 7.812500e-03 : f32
    %31 = vector.broadcast %cst_15 : f32 to vector<2x1xf32>
    %32 = arith.mulf %9, %31 : vector<2x1xf32>
    %cst_16 = arith.constant 7.812500e-03 : f32
    %33 = vector.broadcast %cst_16 : f32 to vector<2x1xf32>
    %34 = arith.mulf %11, %33 : vector<2x1xf32>
    %35 = arith.mulf %5, %32 : vector<2x1xf32>
    %36 = arith.mulf %7, %34 : vector<2x1xf32>
    %37 = arith.addf %35, %36 : vector<2x1xf32>
    %38 = arith.subf %16, %37 : vector<2x1xf32>
    %39 = arith.mulf %7, %32 : vector<2x1xf32>
    %40 = arith.mulf %5, %34 : vector<2x1xf32>
    %41 = arith.subf %39, %40 : vector<2x1xf32>
    %42 = arith.subf %21, %41 : vector<2x1xf32>
    %43 = arith.mulf %9, %32 : vector<2x1xf32>
    %44 = arith.mulf %11, %34 : vector<2x1xf32>
    %45 = arith.addf %43, %44 : vector<2x1xf32>
    %46 = arith.subf %26, %45 : vector<2x1xf32>
    %cst_17 = arith.constant 9.99999993E-9 : f32
    %47 = vector.broadcast %cst_17 : f32 to vector<2x1xf32>
    %48 = arith.addf %46, %47 : vector<2x1xf32>
    %49 = arith.divf %38, %48 : vector<2x1xf32>
    %50 = arith.divf %42, %48 : vector<2x1xf32>
    %51 = arith.mulf %49, %49 : vector<2x1xf32>
    %52 = arith.mulf %50, %50 : vector<2x1xf32>
    %53 = arith.addf %51, %52 : vector<2x1xf32>
    %54 = arith.mulf %53, %46 : vector<2x1xf32>
    %55 = arith.mulf %49, %32 : vector<2x1xf32>
    %56 = arith.mulf %50, %34 : vector<2x1xf32>
    %57 = arith.subf %55, %56 : vector<2x1xf32>
    %58 = arith.subf %28, %57 : vector<2x1xf32>
    %59 = arith.mulf %49, %34 : vector<2x1xf32>
    %60 = arith.mulf %50, %32 : vector<2x1xf32>
    %61 = arith.addf %59, %60 : vector<2x1xf32>
    %62 = arith.subf %30, %61 : vector<2x1xf32>
    %63 = vector.broadcast %49 : vector<2x1xf32> to vector<2x128xf32>
    %64 = arith.mulf %63, %2 : vector<2x128xf32>
    %65 = vector.broadcast %50 : vector<2x1xf32> to vector<2x128xf32>
    %66 = arith.mulf %65, %3 : vector<2x128xf32>
    %67 = arith.subf %64, %66 : vector<2x128xf32>
    %68 = arith.subf %0, %67 : vector<2x128xf32>
    %69 = vector.broadcast %58 : vector<2x1xf32> to vector<2x128xf32>
    %70 = arith.subf %68, %69 : vector<2x128xf32>
    %71 = vector.broadcast %49 : vector<2x1xf32> to vector<2x128xf32>
    %72 = arith.mulf %71, %3 : vector<2x128xf32>
    %73 = vector.broadcast %50 : vector<2x1xf32> to vector<2x128xf32>
    %74 = arith.mulf %73, %2 : vector<2x128xf32>
    %75 = arith.addf %72, %74 : vector<2x128xf32>
    %76 = arith.subf %1, %75 : vector<2x128xf32>
    %77 = vector.broadcast %62 : vector<2x1xf32> to vector<2x128xf32>
    %78 = arith.subf %76, %77 : vector<2x128xf32>
    %79 = arith.mulf %70, %70 : vector<2x128xf32>
    %80 = arith.mulf %78, %78 : vector<2x128xf32>
    %81 = arith.addf %79, %80 : vector<2x128xf32>
    %cst_18 = arith.constant dense<0.000000e+00> : vector<2xf32>
    %82 = vector.multi_reduction <add>, %81, %cst_18 [1] : vector<2x128xf32> to vector<2xf32>
    %83 = vector.shape_cast %82 : vector<2xf32> to vector<2x1xf32>
    %cst_19 = arith.constant 9.99999993E-9 : f32
    %84 = vector.broadcast %cst_19 : f32 to vector<2x1xf32>
    %85 = arith.addf %83, %84 : vector<2x1xf32>
    %86 = arith.divf %54, %85 : vector<2x1xf32>
    %87 = math.log %86 : vector<2x1xf32>
    %cst_20 = arith.constant 0.434294492 : f32
    %88 = vector.broadcast %cst_20 : f32 to vector<2x1xf32>
    %89 = arith.mulf %87, %88 : vector<2x1xf32>
    %cst_21 = arith.constant 1.000000e+01 : f32
    %90 = vector.broadcast %cst_21 : f32 to vector<2x1xf32>
    %91 = arith.mulf %90, %89 : vector<2x1xf32>
    %c0_22 = arith.constant 0 : index
    %c0_23 = arith.constant 0 : index
    %92 = vector.load %arg5[%c0_22, %c0_23] : memref<2x1xf32, #tpu.memory_space<vmem>>, vector<2x1xf32>
    tpu.vector_store %arg5[%c0_22, %c0_23], %91 {strides = array<i32>} : memref<2x1xf32, #tpu.memory_space<vmem>>, vector<2x1xf32>,
    return
  }
  func.func @transform_0(%arg0: i32) -> (i32, i32) {
    %c0_i32 = arith.constant 0 : i32
    %c0_i32_0 = arith.constant 0 : i32
    return %arg0, %c0_i32 : i32, i32
  }
  func.func @transform_1(%arg0: i32) -> (i32, i32) {
    %c0_i32 = arith.constant 0 : i32
    %c0_i32_0 = arith.constant 0 : i32
    return %arg0, %c0_i32 : i32, i32
  }
  func.func @transform_2(%arg0: i32) -> (i32, i32) {
    %c0_i32 = arith.constant 0 : i32
    %c0_i32_0 = arith.constant 0 : i32
    return %arg0, %c0_i32 : i32, i32
  }
  func.func @transform_3(%arg0: i32) -> (i32, i32) {
    %c0_i32 = arith.constant 0 : i32
    %c0_i32_0 = arith.constant 0 : i32
    return %arg0, %c0_i32 : i32, i32
  }
  func.func @transform_4(%arg0: i32) -> (i32, i32) {
    %c0_i32 = arith.constant 0 : i32
    %c0_i32_0 = arith.constant 0 : i32
    return %arg0, %c0_i32 : i32, i32
  }
}

</mosaic_0001>

<llo_original>
// kernel: csisnr_loss_planar.1
$region0: #{csisnr_loss_planar.1}
  #allocation0 [shape = 'u32[]', space=smem, size = 0x4, offset = 0x4, fixed_abs, tag = 'smem constant byte address 0x4 - core index']
  #allocation1 [shape = 'u32[144,128]{1,0:T(1,128)}', space=vmem, size = 0x12000, scoped, tag = 'internal scratch']
  %s0 = inlined_call_operand.hbm [shape: f32[2,128], index: 0, kind: input, shape index: {}]
  %s1 = inlined_call_operand.hbm [shape: f32[2,128], index: 1, kind: input, shape index: {}]
  %s2 = inlined_call_operand.vmem [shape: f32[2,128], index: 2, kind: input, shape index: {}]
  %s3 = inlined_call_operand.vmem [shape: f32[2,128], index: 3, kind: input, shape index: {}]
  %s4 = inlined_call_operand.vmem [shape: f32[2,1], index: 4, kind: output, shape index: {}]
  %s5 = sld [smem:[#allocation0]]
  $region34: #{csisnr_loss_planar.1} parent=0
    _
  %s7 = ssub.s32 1, %s5
  %s8 = scalar_select 0, %s7, %s5
  $region1: #{csisnr_loss_planar.1} parent=0
    #allocation2 [shape = 'u8[1024]{0}', space=vmem, size = 0x400, scoped, tag = 'input window, operand 0, single buffered']
    #allocation3 [shape = 's32[1]{0}', space=sflag, size = 0x4, scoped, tag = 'scoped memory for csisnr_loss_planar.1']
    #allocation4 [shape = 'u8[1024]{0}', space=vmem, size = 0x400, scoped, tag = 'input window, operand 1, single buffered']
    #allocation5 [shape = 's32[1]{0}', space=sflag, size = 0x4, scoped, tag = 'scoped memory for csisnr_loss_planar.1']
    %9 = vsyncpa [#allocation3], 0
    %10 = vsyncpa [#allocation5], 0
    // Predicated region
    $region2: #{csisnr_loss_planar.1} parent=1 // pred_check
      _
    $region3: #{csisnr_loss_planar.1} parent=1 // pred_check_branch
      %12 = sbr.rel (0) target = $region5
    $region4: #{csisnr_loss_planar.1} parent=1 // pred_region
      %s14 = ssub.s32 32, 32
      %15 = vsyncadd [#allocation3], %s14
      %s17 = sshll.u32 [#allocation2], 4
      %s18 = int_to_ptr.vmem [resolvable:$true] %s17
      %20 = dma.hbm_to_vmem [thread:$0]  %s0, 32, %s18, [#allocation3]
    $region5: #{csisnr_loss_planar.1} parent=1 // pred_fallthru
      _
    // Predicated region
    $region6: #{csisnr_loss_planar.1} parent=1 // pred_check
      _
    $region7: #{csisnr_loss_planar.1} parent=1 // pred_check_branch
      %22 = sbr.rel (0) target = $region9
    $region8: #{csisnr_loss_planar.1} parent=1 // pred_region
      %s24 = ssub.s32 32, 32
      %25 = vsyncadd [#allocation5], %s24
      %s27 = sshll.u32 [#allocation4], 4
      %s28 = int_to_ptr.vmem [resolvable:$true] %s27
      %30 = dma.hbm_to_vmem [thread:$0]  %s1, 32, %s28, [#allocation5]
    $region9: #{csisnr_loss_planar.1} parent=1 // pred_fallthru
      _
    // Predicated region
    $region10: #{csisnr_loss_planar.1} parent=1 // pred_check
      _
    $region11: #{csisnr_loss_planar.1} parent=1 // pred_check_branch
      %32 = sbr.rel (0) target = $region13
    $region12: #{csisnr_loss_planar.1} parent=1 // pred_region
      _
    $region13: #{csisnr_loss_planar.1} parent=1 // pred_fallthru
      _
    // Predicated region
    $region14: #{csisnr_loss_planar.1} parent=1 // pred_check
      _
    $region15: #{csisnr_loss_planar.1} parent=1 // pred_check_branch
      %34 = sbr.rel (0) target = $region17
    $region16: #{csisnr_loss_planar.1} parent=1 // pred_region
      _
    $region17: #{csisnr_loss_planar.1} parent=1 // pred_fallthru
      _
    // Predicated region
    $region18: #{csisnr_loss_planar.1} parent=1 // pred_check
      _
    $region19: #{csisnr_loss_planar.1} parent=1 // pred_check_branch
      %36 = sbr.rel (0) target = $region21
    $region20: #{csisnr_loss_planar.1} parent=1 // pred_region
      %37 = dma.done [#allocation3], 32
    $region21: #{csisnr_loss_planar.1} parent=1 // pred_fallthru
      _
    // Predicated region
    $region22: #{csisnr_loss_planar.1} parent=1 // pred_check
      _
    $region23: #{csisnr_loss_planar.1} parent=1 // pred_check_branch
      %39 = sbr.rel (0) target = $region25
    $region24: #{csisnr_loss_planar.1} parent=1 // pred_region
      %40 = dma.done [#allocation5], 32
    $region25: #{csisnr_loss_planar.1} parent=1 // pred_fallthru
      _
    %v41 = vld [vmem:[#allocation2] sm:$0x3]
    %v42 = vld [vmem:[#allocation4] sm:$0x3]
    %v43 = vld [vmem:[%s2] sm:$0x3]
    %v44 = vld [vmem:[%s3] sm:$0x3]
    %vm45 = vcmask 1041408
    %v46 = vsel %vm45, %v41, 0.0
    %47 = vadd.xlane.f32.xlu0 %v46
    %v48 = vpop.xlane.xlu0 %47
    %v49 = vsel %vm45, %v42, 0.0
    %50 = vadd.xlane.f32.xlu0 %v49
    %v51 = vpop.xlane.xlu0 %50
    %v52 = vsel %vm45, %v43, 0.0
    %53 = vadd.xlane.f32.xlu0 %v52
    %v54 = vpop.xlane.xlu0 %53
    %v55 = vsel %vm45, %v44, 0.0
    %56 = vadd.xlane.f32.xlu0 %v55
    %v57 = vpop.xlane.xlu0 %56
    %v58 = vmul.f32 %v41, %v43
    %v59 = vmul.f32 %v42, %v44
    %v60 = vadd.f32 %v58, %v59
    %v61 = vsel %vm45, %v60, 0.0
    %62 = vadd.xlane.f32.xlu0 %v61
    %v63 = vpop.xlane.xlu0 %62
    %v64 = vmul.f32 %v42, %v43
    %v65 = vmul.f32 %v41, %v44
    %v66 = vsub.f32 %v64, %v65
    %v67 = vsel %vm45, %v66, 0.0
    %68 = vadd.xlane.f32.xlu0 %v67
    %v69 = vpop.xlane.xlu0 %68
    %v70 = vmul.f32 %v43, %v43
    %v71 = vmul.f32 %v44, %v44
    %v72 = vadd.f32 %v70, %v71
    %v73 = vsel %vm45, %v72, 0.0
    %74 = vadd.xlane.f32.xlu0 %v73
    %v75 = vpop.xlane.xlu0 %74
    %v76 = vmul.f32 %v48, 0.0078125
    %v77 = vmul.f32 %v51, 0.0078125
    %v78 = vmul.f32 %v54, 0.0078125
    %v79 = vmul.f32 %v57, 0.0078125
    %v80 = vmul.f32 %v48, %v78
    %v81 = vmul.f32 %v51, %v79
    %v82 = vadd.f32 %v80, %v81
    %v83 = vsub.f32 %v63, %v82
    %v84 = vmul.f32 %v51, %v78
    %v85 = vmul.f32 %v48, %v79
    %v86 = vsub.f32 %v84, %v85
    %v87 = vsub.f32 %v69, %v86
    %v88 = vmul.f32 %v54, %v78
    %v89 = vmul.f32 %v57, %v79
    %v90 = vadd.f32 %v88, %v89
    %v91 = vsub.f32 %v75, %v90
    %v92 = vadd.f32 %v91, 1e-08
    %v93 = vrcp.pop %v92
    %v94 = vmul.f32 %v83, %v93
    %v95 = vmul.f32 %v87, %v93
    %v96 = vmul.f32 %v94, %v94
    %v97 = vmul.f32 %v95, %v95
    %v98 = vadd.f32 %v96, %v97
    %v99 = vmul.f32 %v98, %v91
    %v100 = vmul.f32 %v94, %v78
    %v101 = vmul.f32 %v95, %v79
    %v102 = vsub.f32 %v100, %v101
    %v103 = vsub.f32 %v76, %v102
    %v104 = vmul.f32 %v94, %v79
    %v105 = vmul.f32 %v95, %v78
    %v106 = vadd.f32 %v104, %v105
    %v107 = vsub.f32 %v77, %v106
    %v108 = vmul.f32 %v94, %v43
    %v109 = vmul.f32 %v95, %v44
    %v110 = vsub.f32 %v108, %v109
    %v111 = vsub.f32 %v41, %v110
    %v112 = vsub.f32 %v111, %v103
    %v113 = vmul.f32 %v94, %v44
    %v114 = vmul.f32 %v95, %v43
    %v115 = vadd.f32 %v113, %v114
    %v116 = vsub.f32 %v42, %v115
    %v117 = vsub.f32 %v116, %v107
    %v118 = vmul.f32 %v112, %v112
    %v119 = vmul.f32 %v117, %v117
    %v120 = vadd.f32 %v118, %v119
    %v121 = vsel %vm45, %v120, 0.0
    %122 = vadd.xlane.f32.xlu0 %v121
    %v123 = vpop.xlane.xlu0 %122
    %v124 = vadd.f32 %v123, 1e-08
    %v125 = vrcp.pop %v124
    %v126 = vmul.f32 %v99, %v125
    %v127 = vlog2.pop %v126
    %v128 = vmul.f32 %v127, 0.6931472
    %v129 = vmul.f32 %v128, 0.4342945
    %v130 = vmul.f32 %v129, 10.0
    %vm131 = vcmask 1024
    %132 = vst.msk [vmem:[%s4] sm:$0x3] %vm131, %v130
    // Predicated region
    $region26: #{csisnr_loss_planar.1} parent=1 // pred_check
      _
    $region27: #{csisnr_loss_planar.1} parent=1 // pred_check_branch
      %134 = sbr.rel (0) target = $region29
    $region28: #{csisnr_loss_planar.1} parent=1 // pred_region
      _
    $region29: #{csisnr_loss_planar.1} parent=1 // pred_fallthru
      _
    // Predicated region
    $region30: #{csisnr_loss_planar.1} parent=1 // pred_check
      _
    $region31: #{csisnr_loss_planar.1} parent=1 // pred_check_branch
      %136 = sbr.rel (0) target = $region33
    $region32: #{csisnr_loss_planar.1} parent=1 // pred_region
      _
    $region33: #{csisnr_loss_planar.1} parent=1 // pred_fallthru
      _
    %137 = vsyncpa [#allocation3], 1
    %138 = vsyncpa [#allocation5], 1

</llo_original>
